<compile_context>
chip_gen: v7x
topology: tpu7x:2x2x1
jax: 0.10.0
libtpu: 0.0.40
codegen_flags: <defaults>
</compile_context>

<pallas_src>
import functools

import jax
import jax.numpy as jnp
from jax.experimental import pallas as pl
from jax.experimental.pallas import tpu as pltpu

BN_EPS = 1e-5


def _round_up(x, m):
    return ((x + m - 1) // m) * m


def _cdiv(a, b):
    return (a + b - 1) // b


def _affine_kernel(c_ref, w1_ref, b1_ref, g_ref, be_ref,
                   w2s_ref, b2s_ref, w2b_ref, b2b_ref, x_ref,
                   o_ref, scale_ref, bias_ref,
                   *, true_b, d_pad, tb, t_half):
    """Fused scale/bias MLP (once per core) + memory-bound affine apply."""

    # ---- Stage 1: scale/bias MLP into VMEM scratch, first inner step per core. ----
    @pl.when(pl.program_id(1) == 0)
    def _():
        c = c_ref[...].astype(jnp.float32)
        # First Linear of BOTH branches in one MXU push (columns concatenated).
        h = jnp.dot(c, w1_ref[...].astype(jnp.float32),
                    preferred_element_type=jnp.float32) + b1_ref[...]
        # BatchNorm1d training-mode stats over the TRUE batch rows only
        # (zero-padded rows are masked out; biased batch variance, eps=1e-5).
        row = jax.lax.broadcasted_iota(jnp.int32, (h.shape[0], 1), 0)
        valid = (row < true_b).astype(jnp.float32)
        inv_b = 1.0 / true_b
        mean = jnp.sum(h * valid, axis=0, keepdims=True) * inv_b
        dcen = (h - mean) * valid
        var = jnp.sum(dcen * dcen, axis=0, keepdims=True) * inv_b
        h = (h - mean) * jax.lax.rsqrt(var + BN_EPS) * g_ref[...] + be_ref[...]
        h = jnp.maximum(h, 0.0)
        hs = h[:, :d_pad]          # 128-aligned column split -> no relayout copy
        hb = h[:, d_pad:]
        scale_ref[...] = jnp.exp(
            jnp.dot(hs, w2s_ref[...].astype(jnp.float32),
                    preferred_element_type=jnp.float32) + b2s_ref[...])
        bias_ref[...] = (
            jnp.dot(hb, w2b_ref[...].astype(jnp.float32),
                    preferred_element_type=jnp.float32) + b2b_ref[...])

    # ---- Stage 2: x * scale + bias on this row tile; sb read from VMEM scratch. ----
    r0 = (pl.program_id(0) * t_half + pl.program_id(1)) * tb
    r0 = pl.multiple_of(r0, 8)
    sc = scale_ref[pl.ds(r0, tb), :]
    bs = bias_ref[pl.ds(r0, tb), :]
    o_ref[...] = (x_ref[...].astype(jnp.float32) * sc + bs).astype(o_ref.dtype)


@jax.jit
def affine_forward(x, c, prepped):
    """x: (B, dim_out), c: (B, dim_c), prepped: fused/padded params (see below)."""
    B, dim_out = x.shape
    d_pad = prepped["w2s"].shape[0]           # dim_out rounded up to 128

    # Row tiling: multiple of 8, ~2 MiB f32 x-block, and exactly dividing the
    # (padded) row count so every grid step is a full, unmasked tile.
    max_block_elems = 512 * 1024              # ~2 MiB f32 per x block (v5e-safe)
    row_cap = max(8, (max_block_elems // d_pad) // 8 * 8)
    tb0 = min(row_cap, _round_up(_cdiv(B, 2), 8))
    t_half = max(1, _cdiv(_cdiv(B, tb0), 2))
    tb = min(row_cap, _round_up(max(1, _cdiv(B, 2 * t_half)), 8))
    b_pad = 2 * t_half * tb

    xp = x
    if (b_pad, d_pad) != (B, dim_out):
        xp = jnp.pad(x, ((0, b_pad - B), (0, d_pad - dim_out)))
    cp = c
    if b_pad != B:
        cp = jnp.pad(c, ((0, b_pad - B), (0, 0)))

    mlp_ops = (cp, prepped["w1"], prepped["b1"], prepped["g"], prepped["be"],
               prepped["w2s"], prepped["b2s"], prepped["w2b"], prepped["b2b"])

    def full_spec(a):
        return pl.BlockSpec(a.shape, lambda i, j: (0,) * a.ndim)

    kernel = functools.partial(_affine_kernel, true_b=B, d_pad=d_pad,
                               tb=tb, t_half=t_half)
    out = pl.pallas_call(
        kernel,
        out_shape=jax.ShapeDtypeStruct((b_pad, d_pad), x.dtype),
        grid=(2, t_half),
        in_specs=[full_spec(a) for a in mlp_ops]
                 + [pl.BlockSpec((tb, d_pad), lambda i, j: (i * t_half + j, 0))],
        out_specs=pl.BlockSpec((tb, d_pad), lambda i, j: (i * t_half + j, 0)),
        scratch_shapes=[pltpu.VMEM((b_pad, d_pad), jnp.float32),   # exp(scale)
                        pltpu.VMEM((b_pad, d_pad), jnp.float32)],  # bias
        compiler_params=pltpu.CompilerParams(
            dimension_semantics=("parallel", "arbitrary")),
    )(*mlp_ops, xp)
    return out[:B, :dim_out]


def init_affine_params(key, dim_out, dim_c, dtype=jnp.float32):
    """Raw params matching the PyTorch module. Linear weights stored as (in, out)."""
    ks = jax.random.split(key, 4)

    def lin(k, fan_in, fan_out):
        bound = 1.0 / jnp.sqrt(fan_in)
        kw, kb = jax.random.split(k)
        w = jax.random.uniform(kw, (fan_in, fan_out), dtype, -bound, bound)
        b = jax.random.uniform(kb, (1, fan_out), dtype, -bound, bound)
        return w, b

    w1s, b1s = lin(ks[0], dim_c, dim_out)
    w2s, b2s = lin(ks[1], dim_out, dim_out)
    w1b, b1b = lin(ks[2], dim_c, dim_out)
    w2b, b2b = lin(ks[3], dim_out, dim_out)
    ones = jnp.ones((1, dim_out), dtype)
    zeros = jnp.zeros((1, dim_out), dtype)
    return dict(
        w1s=w1s, b1s=b1s, gs=ones, bes=zeros, w2s=w2s, b2s=b2s,
        w1b=w1b, b1b=b1b, gb=ones, beb=zeros, w2b=w2b, b2b=b2b,
    )


def prepare_affine_params(p, dim_out):
    """One-time fusion + 128-lane zero padding of both branch MLPs.

    Padded columns carry zero weights/biases end-to-end, so they produce
    exp(0)=1 scales and 0 biases, which multiply/add zero-padded x columns and
    are sliced off in the wrapper -> exact semantics preserved.
    """
    d_pad = _round_up(dim_out, 128)

    def pad_cols(a, width, value=0.0):
        return jnp.pad(a, ((0, 0), (0, width - a.shape[1])), constant_values=value)

    def pad_sq(w):
        return jnp.pad(w, ((0, d_pad - w.shape[0]), (0, d_pad - w.shape[1])))

    w1 = jnp.concatenate([pad_cols(p["w1s"], d_pad), pad_cols(p["w1b"], d_pad)], axis=1)
    b1 = jnp.concatenate([pad_cols(p["b1s"], d_pad), pad_cols(p["b1b"], d_pad)], axis=1)
    g = jnp.concatenate([pad_cols(p["gs"], d_pad, 1.0),
                         pad_cols(p["gb"], d_pad, 1.0)], axis=1)
    be = jnp.concatenate([pad_cols(p["bes"], d_pad), pad_cols(p["beb"], d_pad)], axis=1)
    return dict(
        w1=w1, b1=b1, g=g, be=be,
        w2s=pad_sq(p["w2s"]), b2s=pad_cols(p["b2s"], d_pad),
        w2b=pad_sq(p["w2b"]), b2b=pad_cols(p["b2b"], d_pad),
    )


def _reference(x, c, p):
    def branch(w1, b1, g, be, w2, b2):
        h = c @ w1 + b1
        mean = h.mean(axis=0, keepdims=True)
        var = ((h - mean) ** 2).mean(axis=0, keepdims=True)
        h = (h - mean) / jnp.sqrt(var + BN_EPS) * g + be
        h = jnp.maximum(h, 0.0)
        return h @ w2 + b2
    scale = jnp.exp(branch(p["w1s"], p["b1s"], p["gs"], p["bes"], p["w2s"], p["b2s"]))
    bias = branch(p["w1b"], p["b1b"], p["gb"], p["beb"], p["w2b"], p["b2b"])
    return x * scale + bias


if __name__ == "__main__":
    key = jax.random.PRNGKey(0)

    def run_case(B, dim_out, dim_c, sub):
        kx, kc, kp = jax.random.split(jax.random.fold_in(key, sub), 3)
        x = jax.random.normal(kx, (B, dim_out), jnp.float32)
        c = jax.random.normal(kc, (B, dim_c), jnp.float32)
        params = init_affine_params(kp, dim_out, dim_c)
        prepped = prepare_affine_params(params, dim_out)
        out = affine_forward(x, c, prepped)
        jax.block_until_ready(out)
        ref = _reference(x, c, params)
        assert out.shape == (B, dim_out)
        assert jnp.allclose(out, ref, atol=2e-3, rtol=2e-3), (
            f"mismatch vs reference at B={B}, dim_out={dim_out}, dim_c={dim_c}")

    run_case(4, 32, 8, 0)      # spec-sized toy case (dim_out padded 32 -> 128)
    run_case(64, 128, 16, 1)   # 128-aligned case, no column padding
    run_case(10, 48, 8, 2)     # non-128 / non-8 sizes (row + lane padded, sliced back)
    print("KERNEL_OK")
</pallas_src>

<mosaic_0001>
module attributes {stable_mosaic.version = 11 : i64} {
  func.func @_affine_kernel(%arg0: i32, %arg1: i32, %arg2: memref<16x8xf32, #tpu.memory_space<vmem>>, %arg3: memref<8x256xf32, #tpu.memory_space<vmem>>, %arg4: memref<1x256xf32, #tpu.memory_space<vmem>>, %arg5: memref<1x256xf32, #tpu.memory_space<vmem>>, %arg6: memref<1x256xf32, #tpu.memory_space<vmem>>, %arg7: memref<128x128xf32, #tpu.memory_space<vmem>>, %arg8: memref<1x128xf32, #tpu.memory_space<vmem>>, %arg9: memref<128x128xf32, #tpu.memory_space<vmem>>, %arg10: memref<1x128xf32, #tpu.memory_space<vmem>>, %arg11: memref<8x128xf32, #tpu.memory_space<vmem>>, %arg12: memref<8x128xf32, #tpu.memory_space<vmem>>, %arg13: memref<16x128xf32, #tpu.memory_space<vmem>>, %arg14: memref<16x128xf32, #tpu.memory_space<vmem>>) attributes {dimension_semantics = [#tpu.dimension_semantics<parallel>, #tpu.dimension_semantics<arbitrary>], iteration_bounds = array<i64: 2, 1>, scalar_prefetch = 0 : i64, scratch_operands = 2 : i64, tpu.core_type = #tpu.core_type<tc>, window_params = [{pipeline_mode = #tpu.pipeline_mode<synchronous>, transform_indices = @transform_0, window_bounds = array<i64: 16, 8>}, {pipeline_mode = #tpu.pipeline_mode<synchronous>, transform_indices = @transform_1, window_bounds = array<i64: 8, 256>}, {pipeline_mode = #tpu.pipeline_mode<synchronous>, transform_indices = @transform_2, window_bounds = array<i64: 1, 256>}, {pipeline_mode = #tpu.pipeline_mode<synchronous>, transform_indices = @transform_3, window_bounds = array<i64: 1, 256>}, {pipeline_mode = #tpu.pipeline_mode<synchronous>, transform_indices = @transform_4, window_bounds = array<i64: 1, 256>}, {pipeline_mode = #tpu.pipeline_mode<synchronous>, transform_indices = @transform_5, window_bounds = array<i64: 128, 128>}, {pipeline_mode = #tpu.pipeline_mode<synchronous>, transform_indices = @transform_6, window_bounds = array<i64: 1, 128>}, {pipeline_mode = #tpu.pipeline_mode<synchronous>, transform_indices = @transform_7, window_bounds = array<i64: 128, 128>}, {pipeline_mode = #tpu.pipeline_mode<synchronous>, transform_indices = @transform_8, window_bounds = array<i64: 1, 128>}, {transform_indices = @transform_9, window_bounds = array<i64: 8, 128>}, {transform_indices = @transform_10, window_bounds = array<i64: 8, 128>}]} {
    %c0_i32 = arith.constant 0 : i32
    %0 = arith.cmpi eq, %arg1, %c0_i32 : i32
    %1 = arith.extui %0 : i1 to i32
    %c0_i32_0 = arith.constant 0 : i32
    %2 = arith.cmpi ne, %1, %c0_i32_0 : i32
    scf.if %2 {
      %c0_6 = arith.constant 0 : index
      %c0_7 = arith.constant 0 : index
      %15 = vector.load %arg2[%c0_6, %c0_7] : memref<16x8xf32, #tpu.memory_space<vmem>>, vector<16x8xf32>
      %c0_8 = arith.constant 0 : index
      %c0_9 = arith.constant 0 : index
      %16 = vector.load %arg3[%c0_8, %c0_9] : memref<8x256xf32, #tpu.memory_space<vmem>>, vector<8x256xf32>
      %cst = arith.constant dense<0.000000e+00> : vector<16x256xf32>
      %17 = tpu.matmul %15, %16, %cst {dimension_numbers = #tpu.dot_dimension_numbers<[1], [0], [0], [1], [0, 0, 1, 1], [], []>} : vector<16x8xf32>, vector<8x256xf32>, vector<16x256xf32> -> vector<16x256xf32>
      %c0_10 = arith.constant 0 : index
      %c0_11 = arith.constant 0 : index
      %18 = vector.load %arg4[%c0_10, %c0_11] : memref<1x256xf32, #tpu.memory_space<vmem>>, vector<1x256xf32>
      %19 = vector.broadcast %18 : vector<1x256xf32> to vector<16x256xf32>
      %20 = arith.addf %17, %19 : vector<16x256xf32>
      %21 = tpu.iota {dimensions = array<i32: 0>} : vector<16x1xi32>
      %c4_i32 = arith.constant 4 : i32
      %22 = vector.broadcast %c4_i32 : i32 to vector<16x1xi32>
      %23 = arith.cmpi slt, %21, %22 : vector<16x1xi32>
      %24 = arith.extui %23 : vector<16x1xi1> to vector<16x1xi32>
      %25 = arith.sitofp %24 : vector<16x1xi32> to vector<16x1xf32>
      %26 = vector.broadcast %25 : vector<16x1xf32> to vector<16x256xf32>
      %27 = arith.mulf %20, %26 : vector<16x256xf32>
      %cst_12 = arith.constant dense<0.000000e+00> : vector<256xf32>
      %28 = vector.multi_reduction <add>, %27, %cst_12 [0] : vector<16x256xf32> to vector<256xf32>
      %29 = vector.shape_cast %28 : vector<256xf32> to vector<1x256xf32>
      %cst_13 = arith.constant 2.500000e-01 : f32
      %30 = vector.broadcast %cst_13 : f32 to vector<1x256xf32>
      %31 = arith.mulf %29, %30 : vector<1x256xf32>
      %32 = vector.broadcast %31 : vector<1x256xf32> to vector<16x256xf32>
      %33 = arith.subf %20, %32 : vector<16x256xf32>
      %34 = vector.broadcast %25 : vector<16x1xf32> to vector<16x256xf32>
      %35 = arith.mulf %33, %34 : vector<16x256xf32>
      %36 = arith.mulf %35, %35 : vector<16x256xf32>
      %cst_14 = arith.constant dense<0.000000e+00> : vector<256xf32>
      %37 = vector.multi_reduction <add>, %36, %cst_14 [0] : vector<16x256xf32> to vector<256xf32>
      %38 = vector.shape_cast %37 : vector<256xf32> to vector<1x256xf32>
      %cst_15 = arith.constant 2.500000e-01 : f32
      %39 = vector.broadcast %cst_15 : f32 to vector<1x256xf32>
      %40 = arith.mulf %38, %39 : vector<1x256xf32>
      %41 = vector.broadcast %31 : vector<1x256xf32> to vector<16x256xf32>
      %42 = arith.subf %20, %41 : vector<16x256xf32>
      %cst_16 = arith.constant 9.99999974E-6 : f32
      %43 = vector.broadcast %cst_16 : f32 to vector<1x256xf32>
      %44 = arith.addf %40, %43 : vector<1x256xf32>
      %45 = math.rsqrt %44 : vector<1x256xf32>
      %46 = vector.broadcast %45 : vector<1x256xf32> to vector<16x256xf32>
      %47 = arith.mulf %42, %46 : vector<16x256xf32>
      %c0_17 = arith.constant 0 : index
      %c0_18 = arith.constant 0 : index
      %48 = vector.load %arg5[%c0_17, %c0_18] : memref<1x256xf32, #tpu.memory_space<vmem>>, vector<1x256xf32>
      %49 = vector.broadcast %48 : vector<1x256xf32> to vector<16x256xf32>
      %50 = arith.mulf %47, %49 : vector<16x256xf32>
      %c0_19 = arith.constant 0 : index
      %c0_20 = arith.constant 0 : index
      %51 = vector.load %arg6[%c0_19, %c0_20] : memref<1x256xf32, #tpu.memory_space<vmem>>, vector<1x256xf32>
      %52 = vector.broadcast %51 : vector<1x256xf32> to vector<16x256xf32>
      %53 = arith.addf %50, %52 : vector<16x256xf32>
      %cst_21 = arith.constant 0.000000e+00 : f32
      %54 = vector.broadcast %cst_21 : f32 to vector<16x256xf32>
      %55 = arith.maximumf %53, %54 : vector<16x256xf32>
      %56 = vector.extract_strided_slice %55 {offsets = [0, 0], sizes = [16, 128], strides = [1, 1]} : vector<16x256xf32> to vector<16x128xf32>
      %57 = vector.extract_strided_slice %55 {offsets = [0, 128], sizes = [16, 128], strides = [1, 1]} : vector<16x256xf32> to vector<16x128xf32>
      %c0_22 = arith.constant 0 : index
      %c0_23 = arith.constant 0 : index
      %58 = vector.load %arg7[%c0_22, %c0_23] : memref<128x128xf32, #tpu.memory_space<vmem>>, vector<128x128xf32>
      %cst_24 = arith.constant dense<0.000000e+00> : vector<16x128xf32>
      %59 = tpu.matmul %56, %58, %cst_24 {dimension_numbers = #tpu.dot_dimension_numbers<[1], [0], [0], [1], [0, 0, 1, 1], [], []>} : vector<16x128xf32>, vector<128x128xf32>, vector<16x128xf32> -> vector<16x128xf32>
      %c0_25 = arith.constant 0 : index
      %c0_26 = arith.constant 0 : index
      %60 = vector.load %arg8[%c0_25, %c0_26] : memref<1x128xf32, #tpu.memory_space<vmem>>, vector<1x128xf32>
      %61 = vector.broadcast %60 : vector<1x128xf32> to vector<16x128xf32>
      %62 = arith.addf %59, %61 : vector<16x128xf32>
      %63 = math.exp %62 : vector<16x128xf32>
      %c0_27 = arith.constant 0 : index
      %c0_28 = arith.constant 0 : index
      %64 = vector.load %arg13[%c0_27, %c0_28] : memref<16x128xf32, #tpu.memory_space<vmem>>, vector<16x128xf32>
      tpu.vector_store %arg13[%c0_27, %c0_28], %63 {strides = array<i32>} : memref<16x128xf32, #tpu.memory_space<vmem>>, vector<16x128xf32>,
      %c0_29 = arith.constant 0 : index
      %c0_30 = arith.constant 0 : index
      %65 = vector.load %arg9[%c0_29, %c0_30] : memref<128x128xf32, #tpu.memory_space<vmem>>, vector<128x128xf32>
      %cst_31 = arith.constant dense<0.000000e+00> : vector<16x128xf32>
      %66 = tpu.matmul %57, %65, %cst_31 {dimension_numbers = #tpu.dot_dimension_numbers<[1], [0], [0], [1], [0, 0, 1, 1], [], []>} : vector<16x128xf32>, vector<128x128xf32>, vector<16x128xf32> -> vector<16x128xf32>
      %c0_32 = arith.constant 0 : index
      %c0_33 = arith.constant 0 : index
      %67 = vector.load %arg10[%c0_32, %c0_33] : memref<1x128xf32, #tpu.memory_space<vmem>>, vector<1x128xf32>
      %68 = vector.broadcast %67 : vector<1x128xf32> to vector<16x128xf32>
      %69 = arith.addf %66, %68 : vector<16x128xf32>
      %c0_34 = arith.constant 0 : index
      %c0_35 = arith.constant 0 : index
      %70 = vector.load %arg14[%c0_34, %c0_35] : memref<16x128xf32, #tpu.memory_space<vmem>>, vector<16x128xf32>
      tpu.vector_store %arg14[%c0_34, %c0_35], %69 {strides = array<i32>} : memref<16x128xf32, #tpu.memory_space<vmem>>, vector<16x128xf32>,
    } else {
    }
    %c1_i32 = arith.constant 1 : i32
    %3 = arith.muli %arg0, %c1_i32 : i32
    %4 = arith.addi %3, %arg1 : i32
    %c8_i32 = arith.constant 8 : i32
    %5 = arith.muli %4, %c8_i32 : i32
    %6 = tpu.assume_multiple %5, 8 : i32
    %7 = arith.index_cast %6 : i32 to index
    %c0 = arith.constant 0 : index
    %8 = vector.load %arg13[%7, %c0] : memref<16x128xf32, #tpu.memory_space<vmem>>, vector<8x128xf32>
    %9 = arith.index_cast %6 : i32 to index
    %c0_1 = arith.constant 0 : index
    %10 = vector.load %arg14[%9, %c0_1] : memref<16x128xf32, #tpu.memory_space<vmem>>, vector<8x128xf32>
    %c0_2 = arith.constant 0 : index
    %c0_3 = arith.constant 0 : index
    %11 = vector.load %arg11[%c0_2, %c0_3] : memref<8x128xf32, #tpu.memory_space<vmem>>, vector<8x128xf32>
    %12 = arith.mulf %11, %8 : vector<8x128xf32>
    %13 = arith.addf %12, %10 : vector<8x128xf32>
    %c0_4 = arith.constant 0 : index
    %c0_5 = arith.constant 0 : index
    %14 = vector.load %arg12[%c0_4, %c0_5] : memref<8x128xf32, #tpu.memory_space<vmem>>, vector<8x128xf32>
    tpu.vector_store %arg12[%c0_4, %c0_5], %13 {strides = array<i32>} : memref<8x128xf32, #tpu.memory_space<vmem>>, vector<8x128xf32>,
    return
  }
  func.func @transform_0(%arg0: i32, %arg1: i32) -> (i32, i32) {
    %c0_i32 = arith.constant 0 : i32
    %c0_i32_0 = arith.constant 0 : i32
    %c0_i32_1 = arith.constant 0 : i32
    return %c0_i32, %c0_i32_0 : i32, i32
  }
  func.func @transform_1(%arg0: i32, %arg1: i32) -> (i32, i32) {
    %c0_i32 = arith.constant 0 : i32
    %c0_i32_0 = arith.constant 0 : i32
    %c0_i32_1 = arith.constant 0 : i32
    return %c0_i32, %c0_i32_0 : i32, i32
  }
  func.func @transform_2(%arg0: i32, %arg1: i32) -> (i32, i32) {
    %c0_i32 = arith.constant 0 : i32
    %c0_i32_0 = arith.constant 0 : i32
    %c0_i32_1 = arith.constant 0 : i32
    return %c0_i32, %c0_i32_0 : i32, i32
  }
  func.func @transform_3(%arg0: i32, %arg1: i32) -> (i32, i32) {
    %c0_i32 = arith.constant 0 : i32
    %c0_i32_0 = arith.constant 0 : i32
    %c0_i32_1 = arith.constant 0 : i32
    return %c0_i32, %c0_i32_0 : i32, i32
  }
  func.func @transform_4(%arg0: i32, %arg1: i32) -> (i32, i32) {
    %c0_i32 = arith.constant 0 : i32
    %c0_i32_0 = arith.constant 0 : i32
    %c0_i32_1 = arith.constant 0 : i32
    return %c0_i32, %c0_i32_0 : i32, i32
  }
  func.func @transform_5(%arg0: i32, %arg1: i32) -> (i32, i32) {
    %c0_i32 = arith.constant 0 : i32
    %c0_i32_0 = arith.constant 0 : i32
    %c0_i32_1 = arith.constant 0 : i32
    return %c0_i32, %c0_i32_0 : i32, i32
  }
  func.func @transform_6(%arg0: i32, %arg1: i32) -> (i32, i32) {
    %c0_i32 = arith.constant 0 : i32
    %c0_i32_0 = arith.constant 0 : i32
    %c0_i32_1 = arith.constant 0 : i32
    return %c0_i32, %c0_i32_0 : i32, i32
  }
  func.func @transform_7(%arg0: i32, %arg1: i32) -> (i32, i32) {
    %c0_i32 = arith.constant 0 : i32
    %c0_i32_0 = arith.constant 0 : i32
    %c0_i32_1 = arith.constant 0 : i32
    return %c0_i32, %c0_i32_0 : i32, i32
  }
  func.func @transform_8(%arg0: i32, %arg1: i32) -> (i32, i32) {
    %c0_i32 = arith.constant 0 : i32
    %c0_i32_0 = arith.constant 0 : i32
    %c0_i32_1 = arith.constant 0 : i32
    return %c0_i32, %c0_i32_0 : i32, i32
  }
  func.func @transform_9(%arg0: i32, %arg1: i32) -> (i32, i32) {
    %c1_i32 = arith.constant 1 : i32
    %0 = arith.muli %arg0, %c1_i32 : i32
    %1 = arith.addi %0, %arg1 : i32
    %c0_i32 = arith.constant 0 : i32
    %c0_i32_0 = arith.constant 0 : i32
    return %1, %c0_i32 : i32, i32
  }
  func.func @transform_10(%arg0: i32, %arg1: i32) -> (i32, i32) {
    %c1_i32 = arith.constant 1 : i32
    %0 = arith.muli %arg0, %c1_i32 : i32
    %1 = arith.addi %0, %arg1 : i32
    %c0_i32 = arith.constant 0 : i32
    %c0_i32_0 = arith.constant 0 : i32
    return %1, %c0_i32 : i32, i32
  }
}

</mosaic_0001>

<llo_original>
// kernel: affine_forward.1
$region0: #{affine_forward.1}
  #allocation0 [shape = 'u32[]', space=smem, size = 0x4, offset = 0x4, fixed_abs, tag = 'smem constant byte address 0x4 - core index']
  #allocation1 [shape = 'u32[144,128]{1,0:T(1,128)}', space=vmem, size = 0x12000, scoped, tag = 'internal scratch']
  #allocation2 [shape = 'f32[16,128]{1,0:T(8,128)}', space=vmem, size = 0x2000, scoped, tag = 'scratch operand']
  #allocation3 [shape = 'f32[16,128]{1,0:T(8,128)}', space=vmem, size = 0x2000, scoped, tag = 'scratch operand']
  %s0 = inlined_call_operand.vmem [shape: f32[16,8], index: 0, kind: input, shape index: {}]
  %s1 = inlined_call_operand.vmem [shape: f32[8,256], index: 1, kind: input, shape index: {}]
  %s2 = inlined_call_operand.vmem [shape: f32[1,256], index: 2, kind: input, shape index: {}]
  %s3 = inlined_call_operand.vmem [shape: f32[1,256], index: 3, kind: input, shape index: {}]
  %s4 = inlined_call_operand.vmem [shape: f32[1,256], index: 4, kind: input, shape index: {}]
  %s5 = inlined_call_operand.hbm [shape: f32[128,128], index: 5, kind: input, shape index: {}]
  %s6 = inlined_call_operand.vmem [shape: f32[1,128], index: 6, kind: input, shape index: {}]
  %s7 = inlined_call_operand.hbm [shape: f32[128,128], index: 7, kind: input, shape index: {}]
  %s8 = inlined_call_operand.vmem [shape: f32[1,128], index: 8, kind: input, shape index: {}]
  %s9 = inlined_call_operand.vmem [shape: f32[16,128], index: 9, kind: input, shape index: {}]
  %s10 = inlined_call_operand.vmem [shape: f32[16,128], index: 10, kind: output, shape index: {}]
  %s11 = sld [smem:[#allocation0]]
  $region85: #{affine_forward.1} parent=0
    _
  %s13 = ssub.s32 1, %s11
  %s14 = scalar_select 0, %s13, %s11
  $region1: #{affine_forward.1} parent=0
    #allocation4 [shape = 'u8[65536]{0}', space=vmem, size = 0x10000, scoped, tag = 'input window, operand 5, single buffered']
    #allocation5 [shape = 's32[2]{0}', space=sflag, size = 0x8, scoped, tag = 'scoped memory for affine_forward.1']
    #allocation6 [shape = 'u8[65536]{0}', space=vmem, size = 0x10000, scoped, tag = 'input window, operand 7, single buffered']
    #allocation7 [shape = 's32[1]{0}', space=sflag, size = 0x4, scoped, tag = 'scoped memory for affine_forward.1']
    %15 = vsyncpa [#allocation5], 0
    %16 = vsyncpa [#allocation7], 0
    loop: start=0, step=1, limit=4
    $region2: #{affine_forward.1} parent=1 // loop_pre_header
      _
    $region3: #{affine_forward.1} parent=1 // loop_header
      %s18 = sphi 0, %s22
      %p19 = scmp.ge.s32.totalorder %s18, 4
      %s25 = sphi 0, %s37
      %s26 = sphi 0, %s33
      %s27 = sphi 0, %s25
      %s28 = sphi 0, %s26
      %s29 = sphi 0, %s27
      %s30 = sphi 0, %s28
      %s38 = sphi 0, %s38
      %s40 = sphi 0, %s38
      %s41 = sphi 0, %s40
      %s55 = sphi 0, %s41
      %s59 = sphi 0, %s59
      %s61 = sphi 0, %s59
      %s62 = sphi 0, %s61
      %s76 = sphi 0, %s62
      %s80 = sphi 0, %s80
      %s82 = sphi 0, %s80
      %s83 = sphi 0, %s82
      %s97 = sphi 0, %s83
      %s101 = sphi 0, %s101
      %s103 = sphi 0, %s101
      %s104 = sphi 0, %s103
      %s118 = sphi 0, %s104
      %s122 = sphi 0, %s122
      %s124 = sphi 0, %s122
      %s125 = sphi 0, %s124
      %s139 = sphi 0, %s125
      %s143 = sphi 0, %s143
      %s145 = sphi 0, %s143
      %s146 = sphi 0, %s145
      %s160 = sphi 0, %s146
      %s164 = sphi 0, %s164
      %s166 = sphi 0, %s164
      %s167 = sphi 0, %s166
      %s181 = sphi 0, %s167
      %s185 = sphi 0, %s185
      %s187 = sphi 0, %s185
      %s188 = sphi 0, %s187
      %s202 = sphi 0, %s188
      %s206 = sphi 0, %s206
      %s208 = sphi 0, %s206
      %s209 = sphi 0, %s208
      %s223 = sphi 0, %s209
      %s231 = sphi 0, %s233
      %s234 = sphi 0, %s231
      %s235 = sphi 0, %s234
      %s251 = sphi 0, %s235
      %s259 = sphi 0, %s261
      %s262 = sphi 0, %s259
      %s263 = sphi 0, %s262
      %s279 = sphi 0, %s263
    $region4: #{affine_forward.1} parent=1 // loop_header_branch
      %21 = sbr.rel (%p19) target = $region8
    $region5: #{affine_forward.1} parent=1 // loop_body
      %s23 = ssub.s32 %s18, 1
      %s24 = ssub.s32 %s18, 2
      %s31 = sadd.s32 1, %s26
      %p32 = scmp.ge.s32.totalorder %s31, 1
      %s33 = scalar_select %p32, 0, %s31
      %s34 = sadd.s32 1, %s25
      %s35 = scalar_select %p32, %s34, %s25
      %p36 = scmp.ge.s32.totalorder %s35, 2
      %s37 = scalar_select %p36, 0, %s35
      %s39 = sadd.s32 %s38, 1
      %p42 = scmp.eq.s32.totalorder %s18, 1
      %p43 = scmp.ne.s32.totalorder %s38, %s40
      %p44 = scmp.eq.s32.totalorder %s18, 0
      %p45 = por %p43, %p44
      %p46 = scmp.ne.s32.totalorder %s38, %s40
      %p47 = scmp.eq.s32.totalorder %s23, 1
      %p48 = por %p46, %p47
      %p49 = scmp.ne.s32.totalorder %s40, %s41
      %p50 = scmp.eq.s32.totalorder %s23, 0
      %p51 = por %p49, %p50
      %p52 = scmp.ne.s32.totalorder %s40, %s41
      %p53 = scmp.eq.s32.totalorder %s24, 1
      %p54 = por %p52, %p53
      %p56 = scmp.ne.s32.totalorder %s41, %s55
      %p57 = scmp.eq.s32.totalorder %s24, 0
      %p58 = por %p56, %p57
      %s60 = sadd.s32 %s59, 1
      %p63 = scmp.eq.s32.totalorder %s18, 1
      %p64 = scmp.ne.s32.totalorder %s59, %s61
      %p65 = scmp.eq.s32.totalorder %s18, 0
      %p66 = por %p64, %p65
      %p67 = scmp.ne.s32.totalorder %s59, %s61
      %p68 = scmp.eq.s32.totalorder %s23, 1
      %p69 = por %p67, %p68
      %p70 = scmp.ne.s32.totalorder %s61, %s62
      %p71 = scmp.eq.s32.totalorder %s23, 0
      %p72 = por %p70, %p71
      %p73 = scmp.ne.s32.totalorder %s61, %s62
      %p74 = scmp.eq.s32.totalorder %s24, 1
      %p75 = por %p73, %p74
      %p77 = scmp.ne.s32.totalorder %s62, %s76
      %p78 = scmp.eq.s32.totalorder %s24, 0
      %p79 = por %p77, %p78
      %s81 = sadd.s32 %s80, 1
      %p84 = scmp.eq.s32.totalorder %s18, 1
      %p85 = scmp.ne.s32.totalorder %s80, %s82
      %p86 = scmp.eq.s32.totalorder %s18, 0
      %p87 = por %p85, %p86
      %p88 = scmp.ne.s32.totalorder %s80, %s82
      %p89 = scmp.eq.s32.totalorder %s23, 1
      %p90 = por %p88, %p89
      %p91 = scmp.ne.s32.totalorder %s82, %s83
      %p92 = scmp.eq.s32.totalorder %s23, 0
      %p93 = por %p91, %p92
      %p94 = scmp.ne.s32.totalorder %s82, %s83
      %p95 = scmp.eq.s32.totalorder %s24, 1
      %p96 = por %p94, %p95
      %p98 = scmp.ne.s32.totalorder %s83, %s97
      %p99 = scmp.eq.s32.totalorder %s24, 0
      %p100 = por %p98, %p99
      %s102 = sadd.s32 %s101, 1
      %p105 = scmp.eq.s32.totalorder %s18, 1
      %p106 = scmp.ne.s32.totalorder %s101, %s103
      %p107 = scmp.eq.s32.totalorder %s18, 0
      %p108 = por %p106, %p107
      %p109 = scmp.ne.s32.totalorder %s101, %s103
      %p110 = scmp.eq.s32.totalorder %s23, 1
      %p111 = por %p109, %p110
      %p112 = scmp.ne.s32.totalorder %s103, %s104
      %p113 = scmp.eq.s32.totalorder %s23, 0
      %p114 = por %p112, %p113
      %p115 = scmp.ne.s32.totalorder %s103, %s104
      %p116 = scmp.eq.s32.totalorder %s24, 1
      %p117 = por %p115, %p116
      %p119 = scmp.ne.s32.totalorder %s104, %s118
      %p120 = scmp.eq.s32.totalorder %s24, 0
      %p121 = por %p119, %p120
      %s123 = sadd.s32 %s122, 1
      %p126 = scmp.eq.s32.totalorder %s18, 1
      %p127 = scmp.ne.s32.totalorder %s122, %s124
      %p128 = scmp.eq.s32.totalorder %s18, 0
      %p129 = por %p127, %p128
      %p130 = scmp.ne.s32.totalorder %s122, %s124
      %p131 = scmp.eq.s32.totalorder %s23, 1
      %p132 = por %p130, %p131
      %p133 = scmp.ne.s32.totalorder %s124, %s125
      %p134 = scmp.eq.s32.totalorder %s23, 0
      %p135 = por %p133, %p134
      %p136 = scmp.ne.s32.totalorder %s124, %s125
      %p137 = scmp.eq.s32.totalorder %s24, 1
      %p138 = por %p136, %p137
      %p140 = scmp.ne.s32.totalorder %s125, %s139
      %p141 = scmp.eq.s32.totalorder %s24, 0
      %p142 = por %p140, %p141
      %s144 = sadd.s32 %s143, 1
      %p147 = scmp.eq.s32.totalorder %s18, 1
      %p148 = scmp.ne.s32.totalorder %s143, %s145
      %p149 = scmp.eq.s32.totalorder %s18, 0
      %p150 = por %p148, %p149
      %p151 = scmp.ne.s32.totalorder %s143, %s145
      %p152 = scmp.eq.s32.totalorder %s23, 1
      %p153 = por %p151, %p152
      %p154 = scmp.ne.s32.totalorder %s145, %s146
      %p155 = scmp.eq.s32.totalorder %s23, 0
      %p156 = por %p154, %p155
      %p157 = scmp.ne.s32.totalorder %s145, %s146
      %p158 = scmp.eq.s32.totalorder %s24, 1
      %p159 = por %p157, %p158
      %p161 = scmp.ne.s32.totalorder %s146, %s160
      %p162 = scmp.eq.s32.totalorder %s24, 0
      %p163 = por %p161, %p162
      %s165 = sadd.s32 %s164, 1
      %p168 = scmp.eq.s32.totalorder %s18, 1
      %p169 = scmp.ne.s32.totalorder %s164, %s166
      %p170 = scmp.eq.s32.totalorder %s18, 0
      %p171 = por %p169, %p170
      %p172 = scmp.ne.s32.totalorder %s164, %s166
      %p173 = scmp.eq.s32.totalorder %s23, 1
      %p174 = por %p172, %p173
      %p175 = scmp.ne.s32.totalorder %s166, %s167
      %p176 = scmp.eq.s32.totalorder %s23, 0
      %p177 = por %p175, %p176
      %p178 = scmp.ne.s32.totalorder %s166, %s167
      %p179 = scmp.eq.s32.totalorder %s24, 1
      %p180 = por %p178, %p179
      %p182 = scmp.ne.s32.totalorder %s167, %s181
      %p183 = scmp.eq.s32.totalorder %s24, 0
      %p184 = por %p182, %p183
      %s186 = sadd.s32 %s185, 1
      %p189 = scmp.eq.s32.totalorder %s18, 1
      %p190 = scmp.ne.s32.totalorder %s185, %s187
      %p191 = scmp.eq.s32.totalorder %s18, 0
      %p192 = por %p190, %p191
      %p193 = scmp.ne.s32.totalorder %s185, %s187
      %p194 = scmp.eq.s32.totalorder %s23, 1
      %p195 = por %p193, %p194
      %p196 = scmp.ne.s32.totalorder %s187, %s188
      %p197 = scmp.eq.s32.totalorder %s23, 0
      %p198 = por %p196, %p197
      %p199 = scmp.ne.s32.totalorder %s187, %s188
      %p200 = scmp.eq.s32.totalorder %s24, 1
      %p201 = por %p199, %p200
      %p203 = scmp.ne.s32.totalorder %s188, %s202
      %p204 = scmp.eq.s32.totalorder %s24, 0
      %p205 = por %p203, %p204
      %s207 = sadd.s32 %s206, 1
      %p210 = scmp.eq.s32.totalorder %s18, 1
      %p211 = scmp.ne.s32.totalorder %s206, %s208
      %p212 = scmp.eq.s32.totalorder %s18, 0
      %p213 = por %p211, %p212
      %p214 = scmp.ne.s32.totalorder %s206, %s208
      %p215 = scmp.eq.s32.totalorder %s23, 1
      %p216 = por %p214, %p215
      %p217 = scmp.ne.s32.totalorder %s208, %s209
      %p218 = scmp.eq.s32.totalorder %s23, 0
      %p219 = por %p217, %p218
      %p220 = scmp.ne.s32.totalorder %s208, %s209
      %p221 = scmp.eq.s32.totalorder %s24, 1
      %p222 = por %p220, %p221
      %p224 = scmp.ne.s32.totalorder %s209, %s223
      %p225 = scmp.eq.s32.totalorder %s24, 0
      %p226 = por %p224, %p225
      %s227 = sadd.s32 %s25, %s26
      %s228 = sadd.s32 %s37, %s33
      %s229 = ssub.s32 %s227, %s228
      %p230 = scmp.eq.s32.totalorder %s229, 0
      %s232 = sadd.s32 %s231, 1
      %s233 = scalar_select %p230, %s231, %s232
      %p236 = pneg %p230
      %p237 = scmp.eq.s32.totalorder %s18, 1
      %p238 = por %p236, %p237
      %p239 = scmp.ne.s32.totalorder %s231, %s234
      %p240 = scmp.eq.s32.totalorder %s18, 0
      %p241 = por %p239, %p240
      %p242 = scmp.ne.s32.totalorder %s231, %s234
      %p243 = scmp.eq.s32.totalorder %s23, 1
      %p244 = por %p242, %p243
      %p245 = scmp.ne.s32.totalorder %s234, %s235
      %p246 = scmp.eq.s32.totalorder %s23, 0
      %p247 = por %p245, %p246
      %p248 = scmp.ne.s32.totalorder %s234, %s235
      %p249 = scmp.eq.s32.totalorder %s24, 1
      %p250 = por %p248, %p249
      %p252 = scmp.ne.s32.totalorder %s235, %s251
      %p253 = scmp.eq.s32.totalorder %s24, 0
      %p254 = por %p252, %p253
      %s255 = sadd.s32 %s25, %s26
      %s256 = sadd.s32 %s37, %s33
      %s257 = ssub.s32 %s255, %s256
      %p258 = scmp.eq.s32.totalorder %s257, 0
      %s260 = sadd.s32 %s259, 1
      %s261 = scalar_select %p258, %s259, %s260
      %p264 = pneg %p258
      %p265 = scmp.eq.s32.totalorder %s18, 1
      %p266 = por %p264, %p265
      %p267 = scmp.ne.s32.totalorder %s259, %s262
      %p268 = scmp.eq.s32.totalorder %s18, 0
      %p269 = por %p267, %p268
      %p270 = scmp.ne.s32.totalorder %s259, %s262
      %p271 = scmp.eq.s32.totalorder %s23, 1
      %p272 = por %p270, %p271
      %p273 = scmp.ne.s32.totalorder %s262, %s263
      %p274 = scmp.eq.s32.totalorder %s23, 0
      %p275 = por %p273, %p274
      %p276 = scmp.ne.s32.totalorder %s262, %s263
      %p277 = scmp.eq.s32.totalorder %s24, 1
      %p278 = por %p276, %p277
      %p280 = scmp.ne.s32.totalorder %s263, %s279
      %p281 = scmp.eq.s32.totalorder %s24, 0
      %p282 = por %p280, %p281
      %p283 = scmp.le.s32.totalorder 1, %s18
      %p284 = scmp.lt.s32.totalorder %s18, 3
      %p285 = pnand %p283, %p284
      %p286 = pneg %p285
      // Predicated region
      $region9: #{affine_forward.1} parent=5 // pred_check
        _
      $region10: #{affine_forward.1} parent=5 // pred_check_branch
        %288 = sbr.rel (%p285) target = $region12
      $region11: #{affine_forward.1} parent=5 // pred_region
        %s289 = ssub.s32 %s18, 1
        // Predicated region
        $region13: #{affine_forward.1} parent=11 // pred_check
          %p290 = pneg %p51
        $region14: #{affine_forward.1} parent=11 // pred_check_branch
          %292 = sbr.rel (%p290) target = $region16
        $region15: #{affine_forward.1} parent=11 // pred_region
          _
        $region16: #{affine_forward.1} parent=11 // pred_fallthru
          _
        // Predicated region
        $region17: #{affine_forward.1} parent=11 // pred_check
          %p293 = pneg %p72
        $region18: #{affine_forward.1} parent=11 // pred_check_branch
          %295 = sbr.rel (%p293) target = $region20
        $region19: #{affine_forward.1} parent=11 // pred_region
          _
        $region20: #{affine_forward.1} parent=11 // pred_fallthru
          _
        // Predicated region
        $region21: #{affine_forward.1} parent=11 // pred_check
          %p296 = pneg %p93
        $region22: #{affine_forward.1} parent=11 // pred_check_branch
          %298 = sbr.rel (%p296) target = $region24
        $region23: #{affine_forward.1} parent=11 // pred_region
          _
        $region24: #{affine_forward.1} parent=11 // pred_fallthru
          _
        // Predicated region
        $region25: #{affine_forward.1} parent=11 // pred_check
          %p299 = pneg %p114
        $region26: #{affine_forward.1} parent=11 // pred_check_branch
          %301 = sbr.rel (%p299) target = $region28
        $region27: #{affine_forward.1} parent=11 // pred_region
          _
        $region28: #{affine_forward.1} parent=11 // pred_fallthru
          _
        // Predicated region
        $region29: #{affine_forward.1} parent=11 // pred_check
          %p302 = pneg %p135
        $region30: #{affine_forward.1} parent=11 // pred_check_branch
          %304 = sbr.rel (%p302) target = $region32
        $region31: #{affine_forward.1} parent=11 // pred_region
          _
        $region32: #{affine_forward.1} parent=11 // pred_fallthru
          _
        // Predicated region
        $region33: #{affine_forward.1} parent=11 // pred_check
          %p305 = pneg %p156
        $region34: #{affine_forward.1} parent=11 // pred_check_branch
          %307 = sbr.rel (%p305) target = $region36
        $region35: #{affine_forward.1} parent=11 // pred_region
          %s309 = ssub.s32 2048, 2048
          %310 = vsyncadd [#allocation5], %s309
          %s311 = sshll.u32 [#allocation4], 4
          %s312 = int_to_ptr.vmem [resolvable:$true] %s311
          %317 = dma.hbm_to_vmem [thread:$0]  %s5, 2048, %s312, [#allocation5], 128, 128, 8
        $region36: #{affine_forward.1} parent=11 // pred_fallthru
          _
        // Predicated region
        $region37: #{affine_forward.1} parent=11 // pred_check
          %p318 = pneg %p177
        $region38: #{affine_forward.1} parent=11 // pred_check_branch
          %320 = sbr.rel (%p318) target = $region40
        $region39: #{affine_forward.1} parent=11 // pred_region
          _
        $region40: #{affine_forward.1} parent=11 // pred_fallthru
          _
        // Predicated region
        $region41: #{affine_forward.1} parent=11 // pred_check
          %p321 = pneg %p198
        $region42: #{affine_forward.1} parent=11 // pred_check_branch
          %323 = sbr.rel (%p321) target = $region44
        $region43: #{affine_forward.1} parent=11 // pred_region
          %s325 = ssub.s32 2048, 2048
          %326 = vsyncadd [#allocation7], %s325
          %s327 = sshll.u32 [#allocation6], 4
          %s328 = int_to_ptr.vmem [resolvable:$true] %s327
          %333 = dma.hbm_to_vmem [thread:$0]  %s7, 2048, %s328, [#allocation7], 128, 128, 8
        $region44: #{affine_forward.1} parent=11 // pred_fallthru
          _
        // Predicated region
        $region45: #{affine_forward.1} parent=11 // pred_check
          %p334 = pneg %p219
        $region46: #{affine_forward.1} parent=11 // pred_check_branch
          %336 = sbr.rel (%p334) target = $region48
        $region47: #{affine_forward.1} parent=11 // pred_region
          _
        $region48: #{affine_forward.1} parent=11 // pred_fallthru
          _
      $region12: #{affine_forward.1} parent=5 // pred_fallthru
        _
      %p337 = scmp.lt.s32.totalorder %s18, 2
      // Predicated region
      $region49: #{affine_forward.1} parent=5 // pred_check
        %p338 = pneg %p337
      $region50: #{affine_forward.1} parent=5 // pred_check_branch
        %340 = sbr.rel (%p338) target = $region52
      $region51: #{affine_forward.1} parent=5 // pred_region
        // Predicated region
        $region53: #{affine_forward.1} parent=51 // pred_check
          %p341 = pneg %p241
        $region54: #{affine_forward.1} parent=51 // pred_check_branch
          %343 = sbr.rel (%p341) target = $region56
        $region55: #{affine_forward.1} parent=51 // pred_region
          %s344 = sadd.s32 %s25, %s26
          %p345 = scmp.lt.s32.totalorder %s344, 1
          %s346 = scalar_select %p345, %s344, 1
          %s347 = smul.addr %s346, 8
          %s348 = scalar_lea.vmem %s9, %s347
          %s349 = sadd.s32 %s25, %s26
        $region56: #{affine_forward.1} parent=51 // pred_fallthru
          _
      $region52: #{affine_forward.1} parent=5 // pred_fallthru
        _
      %p350 = scmp.le.s32.totalorder 1, %s18
      %p351 = scmp.lt.s32.totalorder %s18, 3
      %p352 = pnand %p350, %p351
      %p353 = pneg %p352
      // Predicated region
      $region57: #{affine_forward.1} parent=5 // pred_check
        _
      $region58: #{affine_forward.1} parent=5 // pred_check_branch
        %355 = sbr.rel (%p352) target = $region60
      $region59: #{affine_forward.1} parent=5 // pred_region
        %s356 = ssub.s32 %s18, 1
        // Predicated region
        $region61: #{affine_forward.1} parent=59 // pred_check
          %p357 = pneg %p156
        $region62: #{affine_forward.1} parent=59 // pred_check_branch
          %359 = sbr.rel (%p357) target = $region64
        $region63: #{affine_forward.1} parent=59 // pred_region
          %360 = dma.done [#allocation5], 2048
        $region64: #{affine_forward.1} parent=59 // pred_fallthru
          _
        // Predicated region
        $region65: #{affine_forward.1} parent=59 // pred_check
          %p361 = pneg %p198
        $region66: #{affine_forward.1} parent=59 // pred_check_branch
          %363 = sbr.rel (%p361) target = $region68
        $region67: #{affine_forward.1} parent=59 // pred_region
          %364 = dma.done [#allocation7], 2048
        $region68: #{affine_forward.1} parent=59 // pred_fallthru
          _
        %p365 = pneg %p51
        %p366 = pneg %p48
        %p367 = pneg %p72
        %p368 = pneg %p69
        %p369 = pneg %p93
        %p370 = pneg %p90
        %p371 = pneg %p114
        %p372 = pneg %p111
        %p373 = pneg %p135
        %p374 = pneg %p132
        %p375 = pneg %p156
        %p376 = pneg %p153
        %p377 = pneg %p177
        %p378 = pneg %p174
        %p379 = pneg %p198
        %p380 = pneg %p195
        %p381 = pneg %p219
        %p382 = pneg %p216
        %s383 = sadd.s32 %s27, %s28
        %p384 = scmp.lt.s32.totalorder %s383, 1
        %s385 = scalar_select %p384, %s383, 1
        %s386 = smul.addr %s385, 8
        %s387 = scalar_lea.vmem %s9, %s386
        %p388 = pneg %p247
        %p389 = pneg %p244
        %p390 = pneg %p275
        %p391 = pneg %p272
        %s392 = sadd.s32 %s27, %s28
        %p393 = scmp.lt.s32.totalorder %s392, 1
        %s394 = scalar_select %p393, %s392, 1
        %s395 = smul.addr %s394, 8
        %s396 = scalar_lea.vmem %s10, %s395
        %s397 = sadd.s32 %s27, %s28
        %p398 = scmp.lt.s32.totalorder %s397, 1
        %s399 = scalar_select %p398, %s397, 1
        %s400 = smul.addr %s399, 8
        %s401 = scalar_lea.vmem %s9, %s400
        %s402 = sadd.s32 %s27, %s28
        %s403 = sadd.s32 %s27, %s28
        %p404 = scmp.lt.s32.totalorder %s403, 1
        %s405 = scalar_select %p404, %s403, 1
        %s406 = smul.addr %s405, 8
        %s407 = scalar_lea.vmem %s10, %s406
        %s408 = sadd.s32 %s27, %s28
        %p409 = scmp.eq.s32.totalorder %s28, 0
        // Predicated region
        $region69: #{affine_forward.1} parent=59 // pred_check
          %p410 = pneg %p409
        $region70: #{affine_forward.1} parent=59 // pred_check_branch
          %412 = sbr.rel (%p410) target = $region72
        $region71: #{affine_forward.1} parent=59 // pred_region
          %v413 = vld [vmem:[%s0] sm:$0xff]
          %v414 = vld [vmem:[%s0 + $0x8] sm:$0xff]
          %v415 = vld [vmem:[%s1] sm:$0xff]
          %v416 = vld [vmem:[%s1 + $0x8] sm:$0xff]
          %v417 = vld [vmem:[%s2] sm:$0x3]
          %v419 = vlaneseq
          %v420 = vshrl.u32 %v419, 7
          %v421 = vsub.s32 0, %v420
          %v422 = vrot.slane %v417, %v421
          %v423 = vlaneseq
          %v424 = vshrl.u32 %v423, 7
          %v425 = vsub.s32 1, %v424
          %v426 = vrot.slane %v417, %v425
          %vm429 = vcmask 64512
          %v431 = vsel %vm429, %v413, 0
          %v434 = vsel %vm429, %v414, 0
          %436 = vmatprep.subr.mxu0 %v416
          %437 = vmatpush1.msra.mxu0 %v415
          %438 = vmatprep.subr.mxu0 0.0
          %439 = vmatpush1.msra.mxu0 0.0
          %440 = vmatprep.subr.mxu0 0.0
          %441 = vmatpush1.msra.mxu0 0.0
          %442 = vmatprep.subr.mxu0 0.0
          %443 = vmatpush1.msra.mxu0 0.0
          %444 = vmatprep.subr.mxu0 0.0
          %445 = vmatpush1.msra.mxu0 0.0
          %446 = vmatprep.subr.mxu0 0.0
          %447 = vmatpush1.msra.mxu0 0.0
          %448 = vmatprep.subr.mxu0 0.0
          %449 = vmatpush1.msra.mxu0 0.0
          %450 = vmatprep.subr.mxu0 0.0
          %451 = vmatpush1.msra.mxu0 0.0
          %452 = vmatprep.subr.mxu0 0.0
          %453 = vmatpush1.msra.mxu0 0.0
          %454 = vmatprep.subr.mxu0 0.0
          %455 = vmatpush1.msra.mxu0 0.0
          %456 = vmatprep.subr.mxu0 0.0
          %457 = vmatpush1.msra.mxu0 0.0
          %458 = vmatprep.subr.mxu0 0.0
          %459 = vmatpush1.msra.mxu0 0.0
          %460 = vmatprep.subr.mxu0 0.0
          %461 = vmatpush1.msra.mxu0 0.0
          %462 = vmatprep.subr.mxu0 0.0
          %463 = vmatpush1.msra.mxu0 0.0
          %464 = vmatprep.subr.mxu0 0.0
          %465 = vmatpush1.msra.mxu0 0.0
          %466 = vmatprep.subr.mxu0 0.0
          %467 = vmatpush1.msra.mxu0 0.0
          %468 = vmatprep.subr.mxu0 0.0
          %469 = vmatpush1.msra.mxu0 0.0
          %470 = vmatprep.subr.mxu0 0.0
          %471 = vmatpush1.msra.mxu0 0.0
          %472 = vmatprep.subr.mxu0 0.0
          %473 = vmatpush1.msra.mxu0 0.0
          %474 = vmatprep.subr.mxu0 0.0
          %475 = vmatpush1.msra.mxu0 0.0
          %476 = vmatprep.subr.mxu0 0.0
          %477 = vmatpush1.msra.mxu0 0.0
          %478 = vmatprep.subr.mxu0 0.0
          %479 = vmatpush1.msra.mxu0 0.0
          %480 = vmatprep.subr.mxu0 0.0
          %481 = vmatpush1.msra.mxu0 0.0
          %482 = vmatprep.subr.mxu0 0.0
          %483 = vmatpush1.msra.mxu0 0.0
          %484 = vmatprep.subr.mxu0 0.0
          %485 = vmatpush1.msra.mxu0 0.0
          %486 = vmatprep.subr.mxu0 0.0
          %487 = vmatpush1.msra.mxu0 0.0
          %488 = vmatprep.subr.mxu0 0.0
          %489 = vmatpush1.msra.mxu0 0.0
          %490 = vmatprep.subr.mxu0 0.0
          %491 = vmatpush1.msra.mxu0 0.0
          %492 = vmatprep.subr.mxu0 0.0
          %493 = vmatpush1.msra.mxu0 0.0
          %494 = vmatprep.subr.mxu0 0.0
          %495 = vmatpush1.msra.mxu0 0.0
          %496 = vmatprep.subr.mxu0 0.0
          %497 = vmatpush1.msra.mxu0 0.0
          %498 = vmatprep.subr.mxu0 0.0
          %499 = vmatpush1.msra.mxu0 0.0
          %500 = vmatprep.mubr.f32.mxu0 0.0
          %501 = vmatmul.mubr.f32.gmra.mrb[0].mxu0 %v431
          %v502 = vpop.f32.mrb[0].mxu0
          %v503 = vadd.f32 %v422, %v502
          %v504 = vpop.f32.mrb[0].mxu0
          %v505 = vadd.f32 %v426, %v504
          %506 = vmatprep.mubr.f32.mxu0 0.0
          %507 = vmatmul.mubr.f32.gmra.mrb[0].mxu0 %v434
          %v508 = vpop.f32.mrb[0].mxu0
          %v509 = vadd.f32 %v422, %v508
          %v510 = vpop.f32.mrb[0].mxu0
          %v511 = vadd.f32 %v426, %v510
          %512 = vdwg.mxu0
          %v513 = vlaneseq
          %v514 = vshrl.u32 %v513, 7
          %v515 = vadd.s32 %v514, 8
          %vm516 = vcmp.lt.s32.totalorder %v514, 4
          %vm517 = vcmp.lt.s32.totalorder %v515, 4
          %v518 = vsel %vm516, 1, 0
          %v519 = vsel %vm517, 1, 0
          %v520 = vcvt.s32.f32 %v518
          %v521 = vcvt.s32.f32 %v519
          %v522 = vmul.f32 %v503, %v520
          %v523 = vmul.f32 %v505, %v520
          %v524 = vmul.f32 %v509, %v521
          %v525 = vmul.f32 %v511, %v521
          %v526 = vadd.f32 %v522, %v524
          %v527 = vrot.slane %v526, 4
          %v528 = vadd.f32 %v526, %v527
          %v529 = vrot.slane %v528, 2
          %v530 = vadd.f32 %v528, %v529
          %v531 = vrot.slane %v530, 1
          %v532 = vadd.f32 %v530, %v531
          %v533 = vadd.f32 %v523, %v525
          %v534 = vrot.slane %v533, 4
          %v535 = vadd.f32 %v533, %v534
          %v536 = vrot.slane %v535, 2
          %v537 = vadd.f32 %v535, %v536
          %v538 = vrot.slane %v537, 1
          %v539 = vadd.f32 %v537, %v538
          %v540 = vmul.f32 %v532, 0.25
          %v541 = vmul.f32 %v539, 0.25
          %v542 = vsub.f32 %v503, %v540
          %v543 = vsub.f32 %v505, %v541
          %v544 = vsub.f32 %v509, %v540
          %v545 = vsub.f32 %v511, %v541
          %v546 = vmul.f32 %v542, %v520
          %v547 = vmul.f32 %v543, %v520
          %v548 = vmul.f32 %v544, %v521
          %v549 = vmul.f32 %v545, %v521
          %v550 = vmul.f32 %v546, %v546
          %v551 = vmul.f32 %v547, %v547
          %v552 = vmul.f32 %v548, %v548
          %v553 = vmul.f32 %v549, %v549
          %v554 = vadd.f32 %v550, %v552
          %v555 = vrot.slane %v554, 4
          %v556 = vadd.f32 %v554, %v555
          %v557 = vrot.slane %v556, 2
          %v558 = vadd.f32 %v556, %v557
          %v559 = vrot.slane %v558, 1
          %v560 = vadd.f32 %v558, %v559
          %v561 = vadd.f32 %v551, %v553
          %v562 = vrot.slane %v561, 4
          %v563 = vadd.f32 %v561, %v562
          %v564 = vrot.slane %v563, 2
          %v565 = vadd.f32 %v563, %v564
          %v566 = vrot.slane %v565, 1
          %v567 = vadd.f32 %v565, %v566
          %v568 = vmul.f32 %v560, 0.25
          %v569 = vmul.f32 %v567, 0.25
          %v570 = vadd.f32 %v568, 1e-05
          %v571 = vadd.f32 %v569, 1e-05
          %v572 = vrsqrt.pop %v570
          %v573 = vrsqrt.pop %v571
          %v574 = vmul.f32 %v542, %v572
          %v575 = vmul.f32 %v543, %v573
          %v576 = vmul.f32 %v544, %v572
          %v577 = vmul.f32 %v545, %v573
          %v578 = vld [vmem:[%s3] sm:$0x3]
          %v580 = vlaneseq
          %v581 = vshrl.u32 %v580, 7
          %v582 = vsub.s32 0, %v581
          %v583 = vrot.slane %v578, %v582
          %v584 = vlaneseq
          %v585 = vshrl.u32 %v584, 7
          %v586 = vsub.s32 1, %v585
          %v587 = vrot.slane %v578, %v586
          %v590 = vmul.f32 %v574, %v583
          %v591 = vmul.f32 %v575, %v587
          %v592 = vmul.f32 %v576, %v583
          %v593 = vmul.f32 %v577, %v587
          %v594 = vld [vmem:[%s4] sm:$0x3]
          %v596 = vlaneseq
          %v597 = vshrl.u32 %v596, 7
          %v598 = vsub.s32 0, %v597
          %v599 = vrot.slane %v594, %v598
          %v600 = vlaneseq
          %v601 = vshrl.u32 %v600, 7
          %v602 = vsub.s32 1, %v601
          %v603 = vrot.slane %v594, %v602
          %v606 = vadd.f32 %v590, %v599
          %v607 = vadd.f32 %v591, %v603
          %v608 = vadd.f32 %v592, %v599
          %v609 = vadd.f32 %v593, %v603
          %v610 = vmax.f32 %v606, 0.0
          %v611 = vmax.f32 %v607, 0.0
          %v612 = vmax.f32 %v608, 0.0
          %v613 = vmax.f32 %v609, 0.0
          %v614 = vld [vmem:[#allocation4] sm:$0xff]
          %v615 = vld [vmem:[#allocation4 + $0x8] sm:$0xff]
          %v616 = vld [vmem:[#allocation4 + $0x10] sm:$0xff]
          %v617 = vld [vmem:[#allocation4 + $0x18] sm:$0xff]
          %v618 = vld [vmem:[#allocation4 + $0x20] sm:$0xff]
          %v619 = vld [vmem:[#allocation4 + $0x28] sm:$0xff]
          %v620 = vld [vmem:[#allocation4 + $0x30] sm:$0xff]
          %v621 = vld [vmem:[#allocation4 + $0x38] sm:$0xff]
          %v622 = vld [vmem:[#allocation4 + $0x40] sm:$0xff]
          %v623 = vld [vmem:[#allocation4 + $0x48] sm:$0xff]
          %v624 = vld [vmem:[#allocation4 + $0x50] sm:$0xff]
          %v625 = vld [vmem:[#allocation4 + $0x58] sm:$0xff]
          %v626 = vld [vmem:[#allocation4 + $0x60] sm:$0xff]
          %v627 = vld [vmem:[#allocation4 + $0x68] sm:$0xff]
          %v628 = vld [vmem:[#allocation4 + $0x70] sm:$0xff]
          %v629 = vld [vmem:[#allocation4 + $0x78] sm:$0xff]
          %v630 = vld [vmem:[%s6] sm:$0x1]
          %v632 = vlaneseq
          %v633 = vshrl.u32 %v632, 7
          %v634 = vsub.s32 0, %v633
          %v635 = vrot.slane %v630, %v634
          %637 = vmatprep.subr.mxu0 0.0
          %638 = vmatpush1.msra.mxu0 %v614
          %639 = vmatprep.subr.mxu0 0.0
          %640 = vmatpush1.msra.mxu0 %v615
          %641 = vmatprep.subr.mxu0 0.0
          %642 = vmatpush1.msra.mxu0 %v616
          %643 = vmatprep.subr.mxu0 0.0
          %644 = vmatpush1.msra.mxu0 %v617
          %645 = vmatprep.subr.mxu0 0.0
          %646 = vmatpush1.msra.mxu0 %v618
          %647 = vmatprep.subr.mxu0 0.0
          %648 = vmatpush1.msra.mxu0 %v619
          %649 = vmatprep.subr.mxu0 0.0
          %650 = vmatpush1.msra.mxu0 %v620
          %651 = vmatprep.subr.mxu0 0.0
          %652 = vmatpush1.msra.mxu0 %v621
          %653 = vmatprep.subr.mxu0 0.0
          %654 = vmatpush1.msra.mxu0 %v622
          %655 = vmatprep.subr.mxu0 0.0
          %656 = vmatpush1.msra.mxu0 %v623
          %657 = vmatprep.subr.mxu0 0.0
          %658 = vmatpush1.msra.mxu0 %v624
          %659 = vmatprep.subr.mxu0 0.0
          %660 = vmatpush1.msra.mxu0 %v625
          %661 = vmatprep.subr.mxu0 0.0
          %662 = vmatpush1.msra.mxu0 %v626
          %663 = vmatprep.subr.mxu0 0.0
          %664 = vmatpush1.msra.mxu0 %v627
          %665 = vmatprep.subr.mxu0 0.0
          %666 = vmatpush1.msra.mxu0 %v628
          %667 = vmatprep.subr.mxu0 0.0
          %668 = vmatpush1.msra.mxu0 %v629
          %669 = vmatprep.subr.mxu0 0.0
          %670 = vmatpush1.msra.mxu0 0.0
          %671 = vmatprep.subr.mxu0 0.0
          %672 = vmatpush1.msra.mxu0 0.0
          %673 = vmatprep.subr.mxu0 0.0
          %674 = vmatpush1.msra.mxu0 0.0
          %675 = vmatprep.subr.mxu0 0.0
          %676 = vmatpush1.msra.mxu0 0.0
          %677 = vmatprep.subr.mxu0 0.0
          %678 = vmatpush1.msra.mxu0 0.0
          %679 = vmatprep.subr.mxu0 0.0
          %680 = vmatpush1.msra.mxu0 0.0
          %681 = vmatprep.subr.mxu0 0.0
          %682 = vmatpush1.msra.mxu0 0.0
          %683 = vmatprep.subr.mxu0 0.0
          %684 = vmatpush1.msra.mxu0 0.0
          %685 = vmatprep.subr.mxu0 0.0
          %686 = vmatpush1.msra.mxu0 0.0
          %687 = vmatprep.subr.mxu0 0.0
          %688 = vmatpush1.msra.mxu0 0.0
          %689 = vmatprep.subr.mxu0 0.0
          %690 = vmatpush1.msra.mxu0 0.0
          %691 = vmatprep.subr.mxu0 0.0
          %692 = vmatpush1.msra.mxu0 0.0
          %693 = vmatprep.subr.mxu0 0.0
          %694 = vmatpush1.msra.mxu0 0.0
          %695 = vmatprep.subr.mxu0 0.0
          %696 = vmatpush1.msra.mxu0 0.0
          %697 = vmatprep.subr.mxu0 0.0
          %698 = vmatpush1.msra.mxu0 0.0
          %699 = vmatprep.subr.mxu0 0.0
          %700 = vmatpush1.msra.mxu0 0.0
          %701 = vmatprep.mubr.f32.mxu0 0.0
          %702 = vmatmul.mubr.f32.gmra.mrb[0].mxu0 %v610
          %v703 = vpop.f32.mrb[0].mxu0
          %v704 = vadd.f32 %v635, %v703
          %v705 = vpop.f32.mrb[0].mxu0
          %706 = vmatprep.mubr.f32.mxu0 0.0
          %707 = vmatmul.mubr.f32.gmra.mrb[0].mxu0 %v612
          %v708 = vpop.f32.mrb[0].mxu0
          %v709 = vadd.f32 %v635, %v708
          %v710 = vpop.f32.mrb[0].mxu0
          %711 = vdwg.mxu0
          %v712 = vmul.f32 %v704, 1.442695
          %v713 = vpow.pop %v712
          %v714 = vmul.f32 %v709, 1.442695
          %v715 = vpow.pop %v714
          %716 = vst [vmem:[#allocation2] sm:$0xff] %v713
          %717 = vst [vmem:[#allocation2 + $0x8] sm:$0xff] %v715
          %v718 = vld [vmem:[#allocation6] sm:$0xff]
          %v719 = vld [vmem:[#allocation6 + $0x8] sm:$0xff]
          %v720 = vld [vmem:[#allocation6 + $0x10] sm:$0xff]
          %v721 = vld [vmem:[#allocation6 + $0x18] sm:$0xff]
          %v722 = vld [vmem:[#allocation6 + $0x20] sm:$0xff]
          %v723 = vld [vmem:[#allocation6 + $0x28] sm:$0xff]
          %v724 = vld [vmem:[#allocation6 + $0x30] sm:$0xff]
          %v725 = vld [vmem:[#allocation6 + $0x38] sm:$0xff]
          %v726 = vld [vmem:[#allocation6 + $0x40] sm:$0xff]
          %v727 = vld [vmem:[#allocation6 + $0x48] sm:$0xff]
          %v728 = vld [vmem:[#allocation6 + $0x50] sm:$0xff]
          %v729 = vld [vmem:[#allocation6 + $0x58] sm:$0xff]
          %v730 = vld [vmem:[#allocation6 + $0x60] sm:$0xff]
          %v731 = vld [vmem:[#allocation6 + $0x68] sm:$0xff]
          %v732 = vld [vmem:[#allocation6 + $0x70] sm:$0xff]
          %v733 = vld [vmem:[#allocation6 + $0x78] sm:$0xff]
          %v734 = vld [vmem:[%s8] sm:$0x1]
          %v736 = vlaneseq
          %v737 = vshrl.u32 %v736, 7
          %v738 = vsub.s32 0, %v737
          %v739 = vrot.slane %v734, %v738
          %741 = vmatprep.subr.mxu0 0.0
          %742 = vmatpush1.msra.mxu0 %v718
          %743 = vmatprep.subr.mxu0 0.0
          %744 = vmatpush1.msra.mxu0 %v719
          %745 = vmatprep.subr.mxu0 0.0
          %746 = vmatpush1.msra.mxu0 %v720
          %747 = vmatprep.subr.mxu0 0.0
          %748 = vmatpush1.msra.mxu0 %v721
          %749 = vmatprep.subr.mxu0 0.0
          %750 = vmatpush1.msra.mxu0 %v722
          %751 = vmatprep.subr.mxu0 0.0
          %752 = vmatpush1.msra.mxu0 %v723
          %753 = vmatprep.subr.mxu0 0.0
          %754 = vmatpush1.msra.mxu0 %v724
          %755 = vmatprep.subr.mxu0 0.0
          %756 = vmatpush1.msra.mxu0 %v725
          %757 = vmatprep.subr.mxu0 0.0
          %758 = vmatpush1.msra.mxu0 %v726
          %759 = vmatprep.subr.mxu0 0.0
          %760 = vmatpush1.msra.mxu0 %v727
          %761 = vmatprep.subr.mxu0 0.0
          %762 = vmatpush1.msra.mxu0 %v728
          %763 = vmatprep.subr.mxu0 0.0
          %764 = vmatpush1.msra.mxu0 %v729
          %765 = vmatprep.subr.mxu0 0.0
          %766 = vmatpush1.msra.mxu0 %v730
          %767 = vmatprep.subr.mxu0 0.0
          %768 = vmatpush1.msra.mxu0 %v731
          %769 = vmatprep.subr.mxu0 0.0
          %770 = vmatpush1.msra.mxu0 %v732
          %771 = vmatprep.subr.mxu0 0.0
          %772 = vmatpush1.msra.mxu0 %v733
          %773 = vmatprep.subr.mxu0 0.0
          %774 = vmatpush1.msra.mxu0 0.0
          %775 = vmatprep.subr.mxu0 0.0
          %776 = vmatpush1.msra.mxu0 0.0
          %777 = vmatprep.subr.mxu0 0.0
          %778 = vmatpush1.msra.mxu0 0.0
          %779 = vmatprep.subr.mxu0 0.0
          %780 = vmatpush1.msra.mxu0 0.0
          %781 = vmatprep.subr.mxu0 0.0
          %782 = vmatpush1.msra.mxu0 0.0
          %783 = vmatprep.subr.mxu0 0.0
          %784 = vmatpush1.msra.mxu0 0.0
          %785 = vmatprep.subr.mxu0 0.0
          %786 = vmatpush1.msra.mxu0 0.0
          %787 = vmatprep.subr.mxu0 0.0
          %788 = vmatpush1.msra.mxu0 0.0
          %789 = vmatprep.subr.mxu0 0.0
          %790 = vmatpush1.msra.mxu0 0.0
          %791 = vmatprep.subr.mxu0 0.0
          %792 = vmatpush1.msra.mxu0 0.0
          %793 = vmatprep.subr.mxu0 0.0
          %794 = vmatpush1.msra.mxu0 0.0
          %795 = vmatprep.subr.mxu0 0.0
          %796 = vmatpush1.msra.mxu0 0.0
          %797 = vmatprep.subr.mxu0 0.0
          %798 = vmatpush1.msra.mxu0 0.0
          %799 = vmatprep.subr.mxu0 0.0
          %800 = vmatpush1.msra.mxu0 0.0
          %801 = vmatprep.subr.mxu0 0.0
          %802 = vmatpush1.msra.mxu0 0.0
          %803 = vmatprep.subr.mxu0 0.0
          %804 = vmatpush1.msra.mxu0 0.0
          %805 = vmatprep.mubr.f32.mxu0 0.0
          %806 = vmatmul.mubr.f32.gmra.mrb[0].mxu0 %v611
          %v807 = vpop.f32.mrb[0].mxu0
          %v808 = vadd.f32 %v739, %v807
          %v809 = vpop.f32.mrb[0].mxu0
          %810 = vmatprep.mubr.f32.mxu0 0.0
          %811 = vmatmul.mubr.f32.gmra.mrb[0].mxu0 %v613
          %v812 = vpop.f32.mrb[0].mxu0
          %v813 = vadd.f32 %v739, %v812
          %v814 = vpop.f32.mrb[0].mxu0
          %815 = vdwg.mxu0
          %816 = vst [vmem:[#allocation3] sm:$0xff] %v808
          %817 = vst [vmem:[#allocation3 + $0x8] sm:$0xff] %v813
        $region72: #{affine_forward.1} parent=59 // pred_fallthru
          _
        %s818 = sadd.s32 %s27, %s28
        %s819 = smul.u32 %s818, 8
        %s820 = scalar_lea.vmem [#allocation2], %s819
        %v821 = vld [vmem:[%s820] sm:$0xff]
        %s822 = scalar_lea.vmem [#allocation3], %s819
        %v823 = vld [vmem:[%s822] sm:$0xff]
        %v824 = vld [vmem:[%s401] sm:$0xff]
        %v825 = vmul.f32 %v824, %v821
        %v826 = vadd.f32 %v825, %v823
        %827 = vst [vmem:[%s407] sm:$0xff] %v826
        %s828 = sadd.s32 %s27, %s28
        %p829 = scmp.lt.s32.totalorder %s828, 1
        %s830 = scalar_select %p829, %s828, 1
        %s831 = smul.addr %s830, 8
        %s832 = scalar_lea.vmem %s10, %s831
        // Predicated region
        $region73: #{affine_forward.1} parent=59 // pred_check
          %p833 = pneg %p272
        $region74: #{affine_forward.1} parent=59 // pred_check_branch
          %835 = sbr.rel (%p833) target = $region76
        $region75: #{affine_forward.1} parent=59 // pred_region
          %s836 = sadd.s32 %s27, %s28
        $region76: #{affine_forward.1} parent=59 // pred_fallthru
          _
      $region60: #{affine_forward.1} parent=5 // pred_fallthru
        _
      %p837 = scmp.le.s32.totalorder 2, %s18
      // Predicated region
      $region77: #{affine_forward.1} parent=5 // pred_check
        %p838 = pneg %p837
      $region78: #{affine_forward.1} parent=5 // pred_check_branch
        %840 = sbr.rel (%p838) target = $region80
      $region79: #{affine_forward.1} parent=5 // pred_region
        %s841 = ssub.s32 %s18, 2
        // Predicated region
        $region81: #{affine_forward.1} parent=79 // pred_check
          %p842 = pneg %p278
        $region82: #{affine_forward.1} parent=79 // pred_check_branch
          %844 = sbr.rel (%p842) target = $region84
        $region83: #{affine_forward.1} parent=79 // pred_region
          %s845 = sadd.s32 %s29, %s30
          %p846 = scmp.lt.s32.totalorder %s845, 1
          %s847 = scalar_select %p846, %s845, 1
          %s848 = smul.addr %s847, 8
          %s849 = scalar_lea.vmem %s10, %s848
        $region84: #{affine_forward.1} parent=79 // pred_fallthru
          _
      $region80: #{affine_forward.1} parent=5 // pred_fallthru
        _
    $region6: #{affine_forward.1} parent=1 // loop_footer
      %s22 = sadd.s32 1, %s18
    $region7: #{affine_forward.1} parent=1 // loop_footer_branch
      %17 = sbr.rel target = $region3
    $region8: #{affine_forward.1} parent=1 // loop_exit
      _
    %850 = vsyncpa [#allocation5], 1
    %s851 = scalar_lea.sflag [#allocation5], 1
    %852 = vsyncpa %s851, 1
    %853 = vsyncpa [#allocation7], 1

</llo_original>
